<compile_context>
chip_gen: v7x
topology: tpu7x:2x2x1
jax: 0.10.0
libtpu: 0.0.40
codegen_flags: <defaults>
</compile_context>

<pallas_src>
import functools

import jax
import jax.numpy as jnp
from jax.experimental import pallas as pl
from jax.experimental.pallas import tpu as pltpu

SAVE_FEATURE_NUM = 128   # fc output dim
IN_FEATURES = 200        # fc input dim (K=200 costs same MXU time as K=256; mem-bound, so no pad)
COS_EPS = 1e-8           # F.cosine_similarity default eps
TILE_M_DEFAULT = 2048    # batch rows per grid step (~5.3 MiB double-buffered)
NUM_SPLITS = 2           # leading "parallel" axis (uses both TCs on v7x)


def _round_up(x, m):
    return ((x + m - 1) // m) * m


def _dissimilarity_kernel(g_ref, l_ref, w_ref, b_ref, out_ref, *,
                          tm, n_tiles, batch):
    c = pl.program_id(0)   # split (parallel)
    t = pl.program_id(1)   # batch tile within split (arbitrary / reduction)

    # zero the resident per-split accumulator block at the start of the
    # reduction over batch tiles.
    @pl.when(t == 0)
    def _():
        out_ref[...] = jnp.zeros_like(out_ref)

    # Linear layer on the MXU: (tm, 200) @ (200, 128) + (1, 128)
    d = jnp.dot(l_ref[...], w_ref[...], preferred_element_type=jnp.float32)
    d = d + b_ref[...]                               # broadcast bias over batch
    g = g_ref[...]

    # per-row dot product and squared norms (lane reductions on the XLU)
    w12 = jnp.sum(g * d, axis=-1, keepdims=True)     # (tm, 1)
    w1 = jnp.sum(g * g, axis=-1, keepdims=True)      # (tm, 1)
    w2 = jnp.sum(d * d, axis=-1, keepdims=True)      # (tm, 1)

    # cos = w12 / sqrt(max(w1*w2, eps^2)); rsqrt -> EUP slot (free-ish).
    cos = w12 * jax.lax.rsqrt(jnp.maximum(w1 * w2, COS_EPS * COS_EPS))

    # Mask logical rows >= batch: covers the partial tail block (unspecified
    # padding values) and clamped duplicate blocks.  jnp.where cuts off any
    # NaN/Inf produced by garbage rows.
    row = (c * n_tiles + t) * tm + jax.lax.broadcasted_iota(
        jnp.int32, (tm, 1), 0)
    cos = jnp.where(row < batch, cos, 0.0)

    # per-tile scalar partial sum, accumulated into the resident output block
    # (broadcast over its 128 lanes).
    out_ref[...] += jnp.sum(cos, keepdims=True)


def dissimilarity_loss(global_feature, local_feature, weight, bias,
                       *, tile_m=TILE_M_DEFAULT):
    """global_feature: (B, 128), local_feature: (B, 200),
    weight: (200, 128) (= transpose of PyTorch's (out, in)), bias: (128,).
    Returns scalar f32 loss = -mean(cosine_similarity(g, fc(l)))."""
    B = global_feature.shape[0]
    assert global_feature.shape == (B, SAVE_FEATURE_NUM)
    assert local_feature.shape == (B, IN_FEATURES)
    assert weight.shape == (IN_FEATURES, SAVE_FEATURE_NUM)
    assert bias.shape == (SAVE_FEATURE_NUM,)

    g = global_feature.astype(jnp.float32)
    l = local_feature.astype(jnp.float32)
    w = weight.astype(jnp.float32)
    b2d = bias.astype(jnp.float32).reshape(1, SAVE_FEATURE_NUM)

    # Batch tiling: tm rows per grid step, up to NUM_SPLITS-way outer split.
    tm = min(tile_m, _round_up(B, 8))                # sublane-aligned
    total_tiles = pl.cdiv(B, tm)                     # real batch tiles
    splits = min(NUM_SPLITS, total_tiles)            # never an all-empty split
    n_tiles = pl.cdiv(total_tiles, splits)           # reduction steps per split
    last_tile = total_tiles - 1

    # Clamp the block index so blocks past the last real tile just re-read it
    # (their rows are masked to 0 in the kernel) -> no fully-OOB DMA, no pad.
    def batch_map(c, t):
        return (jnp.minimum(c * n_tiles + t, last_tile), 0)

    cost = pl.CostEstimate(
        flops=2 * B * IN_FEATURES * SAVE_FEATURE_NUM
        + 8 * B * SAVE_FEATURE_NUM,
        transcendentals=B,
        bytes_accessed=B * (IN_FEATURES + SAVE_FEATURE_NUM) * 4
        + IN_FEATURES * SAVE_FEATURE_NUM * 4
        + SAVE_FEATURE_NUM * 4
        + splits * SAVE_FEATURE_NUM * 4,
    )

    kernel = functools.partial(
        _dissimilarity_kernel, tm=tm, n_tiles=n_tiles, batch=B)

    partial = pl.pallas_call(
        kernel,
        out_shape=jax.ShapeDtypeStruct(
            (splits, 1, SAVE_FEATURE_NUM), jnp.float32),
        grid_spec=pltpu.PrefetchScalarGridSpec(
            num_scalar_prefetch=0,
            grid=(splits, n_tiles),
            in_specs=[
                pl.BlockSpec((tm, SAVE_FEATURE_NUM), batch_map),     # global
                pl.BlockSpec((tm, IN_FEATURES), batch_map),          # local
                pl.BlockSpec((IN_FEATURES, SAVE_FEATURE_NUM),
                             lambda c, t: (0, 0)),                   # weight (resident)
                pl.BlockSpec((1, SAVE_FEATURE_NUM),
                             lambda c, t: (0, 0)),                   # bias (resident)
            ],
            out_specs=pl.BlockSpec((1, 1, SAVE_FEATURE_NUM),
                                   lambda c, t: (c, 0, 0)),          # per-split partial
        ),
        compiler_params=pltpu.CompilerParams(
            dimension_semantics=("parallel", "arbitrary")),
        cost_estimate=cost,
    )(g, l, w, b2d)

    total = jnp.sum(partial[:, 0, 0])                # sum the per-split partials
    return -total / jnp.float32(B)                   # mean over the real batch


def _reference(global_feature, local_feature, weight, bias):
    d = local_feature @ weight + bias
    g = global_feature
    w12 = jnp.sum(g * d, axis=-1)
    w1 = jnp.sum(g * g, axis=-1)
    w2 = jnp.sum(d * d, axis=-1)
    cos = w12 / jnp.sqrt(jnp.maximum(w1 * w2, COS_EPS * COS_EPS))
    return -jnp.mean(cos)


if __name__ == "__main__":
    key = jax.random.PRNGKey(0)
    kg, kl, kw, kb = jax.random.split(key, 4)

    B = 10  # not tile aligned: exercises the masked partial-block path
    global_feature = jax.random.normal(kg, (B, SAVE_FEATURE_NUM), dtype=jnp.float32)
    local_feature = jax.random.normal(kl, (B, IN_FEATURES), dtype=jnp.float32)

    # Deterministic fc params (PyTorch-style uniform(-1/sqrt(in), 1/sqrt(in))).
    bound = 1.0 / jnp.sqrt(jnp.float32(IN_FEATURES))
    weight = jax.random.uniform(kw, (IN_FEATURES, SAVE_FEATURE_NUM),
                                dtype=jnp.float32, minval=-bound, maxval=bound)
    bias = jax.random.uniform(kb, (SAVE_FEATURE_NUM,),
                              dtype=jnp.float32, minval=-bound, maxval=bound)

    ref = _reference(global_feature, local_feature, weight, bias)

    # Default tile: single partial block (tm > B), splits = 1.
    loss1 = jax.block_until_ready(
        dissimilarity_loss(global_feature, local_feature, weight, bias))
    # Tiny tile: multi-tile path with 2-way split and a masked tail tile.
    loss2 = jax.block_until_ready(
        dissimilarity_loss(global_feature, local_feature, weight, bias, tile_m=8))

    assert jnp.allclose(loss1, ref, atol=1e-5, rtol=1e-5), (loss1, ref)
    assert jnp.allclose(loss2, ref, atol=1e-5, rtol=1e-5), (loss2, ref)

    print("KERNEL_OK")
</pallas_src>

<mosaic_0001>
module attributes {stable_mosaic.version = 11 : i64} {
  func.func @_dissimilarity_kernel(%arg0: i32, %arg1: i32, %arg2: memref<16x128xf32, #tpu.memory_space<vmem>>, %arg3: memref<16x200xf32, #tpu.memory_space<vmem>>, %arg4: memref<200x128xf32, #tpu.memory_space<vmem>>, %arg5: memref<1x128xf32, #tpu.memory_space<vmem>>, %arg6: memref<1x1x128xf32, #tpu.memory_space<vmem>>) attributes {dimension_semantics = [#tpu.dimension_semantics<parallel>, #tpu.dimension_semantics<arbitrary>], iteration_bounds = array<i64: 1, 1>, scalar_prefetch = 0 : i64, scratch_operands = 0 : i64, tpu.core_type = #tpu.core_type<tc>, window_params = [{transform_indices = @transform_0, window_bounds = array<i64: 16, 128>}, {transform_indices = @transform_1, window_bounds = array<i64: 16, 200>}, {pipeline_mode = #tpu.pipeline_mode<synchronous>, transform_indices = @transform_2, window_bounds = array<i64: 200, 128>}, {pipeline_mode = #tpu.pipeline_mode<synchronous>, transform_indices = @transform_3, window_bounds = array<i64: 1, 128>}, {transform_indices = @transform_4, window_bounds = array<i64: 1, 1, 128>}]} {
    %c0_i32 = arith.constant 0 : i32
    %0 = arith.cmpi eq, %arg1, %c0_i32 : i32
    %1 = arith.extui %0 : i1 to i32
    %c0_i32_0 = arith.constant 0 : i32
    %2 = arith.cmpi ne, %1, %c0_i32_0 : i32
    scf.if %2 {
      %cst_20 = arith.constant 0.000000e+00 : f32
      %44 = vector.broadcast %cst_20 : f32 to vector<1x1x128xf32>
      %c0_21 = arith.constant 0 : index
      %c0_22 = arith.constant 0 : index
      %c0_23 = arith.constant 0 : index
      %45 = vector.load %arg6[%c0_21, %c0_22, %c0_23] : memref<1x1x128xf32, #tpu.memory_space<vmem>>, vector<1x1x128xf32>
      tpu.vector_store %arg6[%c0_21, %c0_22, %c0_23], %44 {strides = array<i32>} : memref<1x1x128xf32, #tpu.memory_space<vmem>>, vector<1x1x128xf32>,
    } else {
    }
    %c0 = arith.constant 0 : index
    %c0_1 = arith.constant 0 : index
    %3 = vector.load %arg3[%c0, %c0_1] : memref<16x200xf32, #tpu.memory_space<vmem>>, vector<16x200xf32>
    %c0_2 = arith.constant 0 : index
    %c0_3 = arith.constant 0 : index
    %4 = vector.load %arg4[%c0_2, %c0_3] : memref<200x128xf32, #tpu.memory_space<vmem>>, vector<200x128xf32>
    %cst = arith.constant dense<0.000000e+00> : vector<16x128xf32>
    %5 = tpu.matmul %3, %4, %cst {dimension_numbers = #tpu.dot_dimension_numbers<[1], [0], [0], [1], [0, 0, 1, 1], [], []>} : vector<16x200xf32>, vector<200x128xf32>, vector<16x128xf32> -> vector<16x128xf32>
    %c0_4 = arith.constant 0 : index
    %c0_5 = arith.constant 0 : index
    %6 = vector.load %arg5[%c0_4, %c0_5] : memref<1x128xf32, #tpu.memory_space<vmem>>, vector<1x128xf32>
    %7 = vector.broadcast %6 : vector<1x128xf32> to vector<16x128xf32>
    %8 = arith.addf %5, %7 : vector<16x128xf32>
    %c0_6 = arith.constant 0 : index
    %c0_7 = arith.constant 0 : index
    %9 = vector.load %arg2[%c0_6, %c0_7] : memref<16x128xf32, #tpu.memory_space<vmem>>, vector<16x128xf32>
    %10 = arith.mulf %9, %8 : vector<16x128xf32>
    %cst_8 = arith.constant dense<0.000000e+00> : vector<16xf32>
    %11 = vector.multi_reduction <add>, %10, %cst_8 [1] : vector<16x128xf32> to vector<16xf32>
    %12 = vector.shape_cast %11 : vector<16xf32> to vector<16x1xf32>
    %13 = arith.mulf %9, %9 : vector<16x128xf32>
    %cst_9 = arith.constant dense<0.000000e+00> : vector<16xf32>
    %14 = vector.multi_reduction <add>, %13, %cst_9 [1] : vector<16x128xf32> to vector<16xf32>
    %15 = vector.shape_cast %14 : vector<16xf32> to vector<16x1xf32>
    %16 = arith.mulf %8, %8 : vector<16x128xf32>
    %cst_10 = arith.constant dense<0.000000e+00> : vector<16xf32>
    %17 = vector.multi_reduction <add>, %16, %cst_10 [1] : vector<16x128xf32> to vector<16xf32>
    %18 = vector.shape_cast %17 : vector<16xf32> to vector<16x1xf32>
    %19 = arith.mulf %15, %18 : vector<16x1xf32>
    %cst_11 = arith.constant 1.000000e-16 : f32
    %20 = vector.broadcast %cst_11 : f32 to vector<16x1xf32>
    %21 = arith.maximumf %19, %20 : vector<16x1xf32>
    %22 = math.rsqrt %21 : vector<16x1xf32>
    %23 = arith.mulf %12, %22 : vector<16x1xf32>
    %c1_i32 = arith.constant 1 : i32
    %24 = arith.muli %arg0, %c1_i32 : i32
    %25 = arith.addi %24, %arg1 : i32
    %c16_i32 = arith.constant 16 : i32
    %26 = arith.muli %25, %c16_i32 : i32
    %27 = tpu.iota {dimensions = array<i32: 0>} : vector<16x1xi32>
    %28 = vector.broadcast %26 : i32 to vector<16x1xi32>
    %29 = arith.addi %28, %27 : vector<16x1xi32>
    %c10_i32 = arith.constant 10 : i32
    %30 = vector.broadcast %c10_i32 : i32 to vector<16x1xi32>
    %31 = arith.cmpi slt, %29, %30 : vector<16x1xi32>
    %cst_12 = arith.constant 0.000000e+00 : f32
    %32 = vector.broadcast %cst_12 : f32 to vector<16x1xf32>
    %33 = arith.select %31, %23, %32 : vector<16x1xi1>, vector<16x1xf32>
    %c0_13 = arith.constant 0 : index
    %c0_14 = arith.constant 0 : index
    %c0_15 = arith.constant 0 : index
    %34 = vector.load %arg6[%c0_13, %c0_14, %c0_15] : memref<1x1x128xf32, #tpu.memory_space<vmem>>, vector<1x1x128xf32>
    %35 = vector.shape_cast %33 : vector<16x1xf32> to vector<1x16x1xf32>
    %cst_16 = arith.constant dense<0.000000e+00> : vector<1xf32>
    %36 = vector.multi_reduction <add>, %35, %cst_16 [1, 2] : vector<1x16x1xf32> to vector<1xf32>
    %37 = vector.shape_cast %36 : vector<1xf32> to vector<1x1x1xf32>
    %38 = vector.extract %37[0, 0, 0] : f32 from vector<1x1x1xf32>
    %39 = vector.broadcast %38 : f32 to vector<1x1xf32>
    %40 = vector.shape_cast %39 : vector<1x1xf32> to vector<1x1x1xf32>
    %41 = vector.broadcast %40 : vector<1x1x1xf32> to vector<1x1x128xf32>
    %42 = arith.addf %34, %41 : vector<1x1x128xf32>
    %c0_17 = arith.constant 0 : index
    %c0_18 = arith.constant 0 : index
    %c0_19 = arith.constant 0 : index
    %43 = vector.load %arg6[%c0_17, %c0_18, %c0_19] : memref<1x1x128xf32, #tpu.memory_space<vmem>>, vector<1x1x128xf32>
    tpu.vector_store %arg6[%c0_17, %c0_18, %c0_19], %42 {strides = array<i32>} : memref<1x1x128xf32, #tpu.memory_space<vmem>>, vector<1x1x128xf32>,
    return
  }
  func.func @transform_0(%arg0: i32, %arg1: i32) -> (i32, i32) {
    %c1_i32 = arith.constant 1 : i32
    %0 = arith.muli %arg0, %c1_i32 : i32
    %1 = arith.addi %0, %arg1 : i32
    %c0_i32 = arith.constant 0 : i32
    %2 = arith.minsi %1, %c0_i32 : i32
    %c0_i32_0 = arith.constant 0 : i32
    %c0_i32_1 = arith.constant 0 : i32
    return %2, %c0_i32_0 : i32, i32
  }
  func.func @transform_1(%arg0: i32, %arg1: i32) -> (i32, i32) {
    %c1_i32 = arith.constant 1 : i32
    %0 = arith.muli %arg0, %c1_i32 : i32
    %1 = arith.addi %0, %arg1 : i32
    %c0_i32 = arith.constant 0 : i32
    %2 = arith.minsi %1, %c0_i32 : i32
    %c0_i32_0 = arith.constant 0 : i32
    %c0_i32_1 = arith.constant 0 : i32
    return %2, %c0_i32_0 : i32, i32
  }
  func.func @transform_2(%arg0: i32, %arg1: i32) -> (i32, i32) {
    %c0_i32 = arith.constant 0 : i32
    %c0_i32_0 = arith.constant 0 : i32
    %c0_i32_1 = arith.constant 0 : i32
    return %c0_i32, %c0_i32_0 : i32, i32
  }
  func.func @transform_3(%arg0: i32, %arg1: i32) -> (i32, i32) {
    %c0_i32 = arith.constant 0 : i32
    %c0_i32_0 = arith.constant 0 : i32
    %c0_i32_1 = arith.constant 0 : i32
    return %c0_i32, %c0_i32_0 : i32, i32
  }
  func.func @transform_4(%arg0: i32, %arg1: i32) -> (i32, i32, i32) {
    %c0_i32 = arith.constant 0 : i32
    %c0_i32_0 = arith.constant 0 : i32
    %c0_i32_1 = arith.constant 0 : i32
    return %arg0, %c0_i32, %c0_i32_0 : i32, i32, i32
  }
}

</mosaic_0001>

<llo_original>
// kernel: tpu_custom_call.1
$region0: #{tpu_custom_call.1}
  #allocation0 [shape = 'u32[]', space=smem, size = 0x4, offset = 0x4, fixed_abs, tag = 'smem constant byte address 0x4 - core index']
  #allocation1 [shape = 'u32[144,128]{1,0:T(1,128)}', space=vmem, size = 0x12000, scoped, tag = 'internal scratch']
  %s0 = inlined_call_operand.hbm [shape: f32[10,128], index: 0, kind: input, shape index: {}]
  %s1 = inlined_call_operand.hbm [shape: f32[10,200], index: 1, kind: input, shape index: {}]
  %s2 = inlined_call_operand.hbm [shape: f32[200,128], index: 2, kind: input, shape index: {}]
  %s3 = inlined_call_operand.vmem [shape: f32[1,128], index: 3, kind: input, shape index: {}]
  %s4 = inlined_call_operand.hbm [shape: f32[1,1,128], index: 4, kind: output, shape index: {}]
  %s5 = sld [smem:[#allocation0]]
  $region42: #{tpu_custom_call.1} parent=0
    _
  %s7 = ssub.s32 1, %s5
  %s8 = scalar_select 0, %s7, %s5
  $region1: #{tpu_custom_call.1} parent=0
    #allocation2 [shape = 'u8[8192]{0}', space=vmem, size = 0x2000, scoped, tag = 'input window, operand 0, single buffered']
    #allocation3 [shape = 's32[1]{0}', space=sflag, size = 0x4, scoped, tag = 'scoped memory for tpu_custom_call.1']
    #allocation4 [shape = 's32[1]{0}', space=sflag, size = 0x4, scoped, tag = 'scoped memory for tpu_custom_call.1']
    #allocation5 [shape = 'u8[16384]{0}', space=vmem, size = 0x4000, scoped, tag = 'input window, operand 1, single buffered']
    #allocation6 [shape = 's32[1]{0}', space=sflag, size = 0x4, scoped, tag = 'scoped memory for tpu_custom_call.1']
    #allocation7 [shape = 'u8[102400]{0}', space=vmem, size = 0x19000, scoped, tag = 'input window, operand 2, single buffered']
    #allocation8 [shape = 'u8[512]{0}', space=vmem, size = 0x400, scoped, tag = 'output window, operand 0, single buffered']
    %9 = vsyncpa [#allocation3], 0
    %10 = vsyncpa [#allocation6], 0
    %11 = vsyncpa [#allocation4], 0
    // Predicated region
    $region2: #{tpu_custom_call.1} parent=1 // pred_check
      _
    $region3: #{tpu_custom_call.1} parent=1 // pred_check_branch
      %13 = sbr.rel (0) target = $region5
    $region4: #{tpu_custom_call.1} parent=1 // pred_region
      %s14 = sadd.s32 0, 0
      %p15 = scmp.lt.s32.totalorder %s14, 0
      %s16 = scalar_select %p15, %s14, 0
      %s17 = smul.u32 2, %s16
      %s19 = ssub.s32 256, 256
      %20 = vsyncadd [#allocation3], %s19
      %s21 = smul.addr %s17, 128
      %s22 = scalar_lea.hbm %s0, %s21
      %s23 = sshll.u32 [#allocation2], 4
      %s24 = int_to_ptr.vmem [resolvable:$true] %s23
      %29 = dma.hbm_to_vmem [thread:$0]  %s22, 256, %s24, [#allocation3], 128, 128, 8
    $region5: #{tpu_custom_call.1} parent=1 // pred_fallthru
      _
    // Predicated region
    $region6: #{tpu_custom_call.1} parent=1 // pred_check
      _
    $region7: #{tpu_custom_call.1} parent=1 // pred_check_branch
      %31 = sbr.rel (0) target = $region9
    $region8: #{tpu_custom_call.1} parent=1 // pred_region
      %s32 = sadd.s32 0, 0
      %p33 = scmp.lt.s32.totalorder %s32, 0
      %s34 = scalar_select %p33, %s32, 0
      %s35 = smul.u32 2, %s34
      %s37 = ssub.s32 512, 512
      %38 = vsyncadd [#allocation6], %s37
      %s39 = smul.addr %s35, 2
      %s40 = smul.addr %s39, 128
      %s41 = scalar_lea.hbm %s1, %s40
      %s42 = sshll.u32 [#allocation5], 4
      %s43 = int_to_ptr.vmem [resolvable:$true] %s42
      %48 = dma.hbm_to_vmem [thread:$0]  %s41, 512, %s43, [#allocation6], 256, 256, 16
    $region9: #{tpu_custom_call.1} parent=1 // pred_fallthru
      _
    // Predicated region
    $region10: #{tpu_custom_call.1} parent=1 // pred_check
      _
    $region11: #{tpu_custom_call.1} parent=1 // pred_check_branch
      %50 = sbr.rel (0) target = $region13
    $region12: #{tpu_custom_call.1} parent=1 // pred_region
      %s52 = ssub.s32 3200, 3200
      %53 = vsyncadd [#allocation6], %s52
      %s54 = sshll.u32 [#allocation7], 4
      %s55 = int_to_ptr.vmem [resolvable:$true] %s54
      %60 = dma.hbm_to_vmem [thread:$0]  %s2, 3200, %s55, [#allocation6], 128, 128, 8
    $region13: #{tpu_custom_call.1} parent=1 // pred_fallthru
      _
    // Predicated region
    $region14: #{tpu_custom_call.1} parent=1 // pred_check
      _
    $region15: #{tpu_custom_call.1} parent=1 // pred_check_branch
      %62 = sbr.rel (0) target = $region17
    $region16: #{tpu_custom_call.1} parent=1 // pred_region
      _
    $region17: #{tpu_custom_call.1} parent=1 // pred_fallthru
      _
    // Predicated region
    $region18: #{tpu_custom_call.1} parent=1 // pred_check
      _
    $region19: #{tpu_custom_call.1} parent=1 // pred_check_branch
      %64 = sbr.rel (0) target = $region21
    $region20: #{tpu_custom_call.1} parent=1 // pred_region
      %65 = dma.done [#allocation3], 256
    $region21: #{tpu_custom_call.1} parent=1 // pred_fallthru
      _
    // Predicated region
    $region22: #{tpu_custom_call.1} parent=1 // pred_check
      _
    $region23: #{tpu_custom_call.1} parent=1 // pred_check_branch
      %67 = sbr.rel (0) target = $region25
    $region24: #{tpu_custom_call.1} parent=1 // pred_region
      %68 = dma.done [#allocation6], 512
    $region25: #{tpu_custom_call.1} parent=1 // pred_fallthru
      _
    // Predicated region
    $region26: #{tpu_custom_call.1} parent=1 // pred_check
      _
    $region27: #{tpu_custom_call.1} parent=1 // pred_check_branch
      %70 = sbr.rel (0) target = $region29
    $region28: #{tpu_custom_call.1} parent=1 // pred_region
      %71 = dma.done [#allocation6], 3200
    $region29: #{tpu_custom_call.1} parent=1 // pred_fallthru
      _
    %s72 = sadd.s32 0, 0
    %p73 = scmp.lt.s32.totalorder %s72, 0
    %s74 = scalar_select %p73, %s72, 0
    %s75 = smul.u32 2, %s74
    %s76 = sadd.s32 0, 0
    %p77 = scmp.lt.s32.totalorder %s76, 0
    %s78 = scalar_select %p77, %s76, 0
    %s79 = smul.u32 2, %s78
    %p80 = scmp.eq.s32.totalorder 0, 0
    // Predicated region
    $region30: #{tpu_custom_call.1} parent=1 // pred_check
      %p81 = pneg %p80
    $region31: #{tpu_custom_call.1} parent=1 // pred_check_branch
      %83 = sbr.rel (%p81) target = $region33
    $region32: #{tpu_custom_call.1} parent=1 // pred_region
      %84 = vst [vmem:[#allocation8] sm:$0x1] 0.0
    $region33: #{tpu_custom_call.1} parent=1 // pred_fallthru
      _
    %v85 = vld [vmem:[#allocation5] sm:$0xff]
    %v86 = vld [vmem:[#allocation5 + $0x8] sm:$0xff]
    %v87 = vld [vmem:[#allocation5 + $0x10] sm:$0xff]
    %v88 = vld [vmem:[#allocation5 + $0x18] sm:$0xff]
    %v89 = vld [vmem:[#allocation7] sm:$0xff]
    %v90 = vld [vmem:[#allocation7 + $0x8] sm:$0xff]
    %v91 = vld [vmem:[#allocation7 + $0x10] sm:$0xff]
    %v92 = vld [vmem:[#allocation7 + $0x18] sm:$0xff]
    %v93 = vld [vmem:[#allocation7 + $0x20] sm:$0xff]
    %v94 = vld [vmem:[#allocation7 + $0x28] sm:$0xff]
    %v95 = vld [vmem:[#allocation7 + $0x30] sm:$0xff]
    %v96 = vld [vmem:[#allocation7 + $0x38] sm:$0xff]
    %v97 = vld [vmem:[#allocation7 + $0x40] sm:$0xff]
    %v98 = vld [vmem:[#allocation7 + $0x48] sm:$0xff]
    %v99 = vld [vmem:[#allocation7 + $0x50] sm:$0xff]
    %v100 = vld [vmem:[#allocation7 + $0x58] sm:$0xff]
    %v101 = vld [vmem:[#allocation7 + $0x60] sm:$0xff]
    %v102 = vld [vmem:[#allocation7 + $0x68] sm:$0xff]
    %v103 = vld [vmem:[#allocation7 + $0x70] sm:$0xff]
    %v104 = vld [vmem:[#allocation7 + $0x78] sm:$0xff]
    %v105 = vld [vmem:[#allocation7 + $0x80] sm:$0xff]
    %v106 = vld [vmem:[#allocation7 + $0x88] sm:$0xff]
    %v107 = vld [vmem:[#allocation7 + $0x90] sm:$0xff]
    %v108 = vld [vmem:[#allocation7 + $0x98] sm:$0xff]
    %v109 = vld [vmem:[#allocation7 + $0xa0] sm:$0xff]
    %v110 = vld [vmem:[#allocation7 + $0xa8] sm:$0xff]
    %v111 = vld [vmem:[#allocation7 + $0xb0] sm:$0xff]
    %v112 = vld [vmem:[#allocation7 + $0xb8] sm:$0xff]
    %v113 = vld [vmem:[#allocation7 + $0xc0] sm:$0xff]
    %v114 = vld [vmem:[%s3] sm:$0x1]
    %v116 = vlaneseq
    %v117 = vshrl.u32 %v116, 7
    %v118 = vsub.s32 0, %v117
    %v119 = vrot.slane %v114, %v118
    %vm121 = vcmask 588800
    %v123 = vsel %vm121, %v86, 0
    %v126 = vsel %vm121, %v88, 0
    %128 = vmatprep.subr.mxu0 0.0
    %129 = vmatpush1.msra.mxu0 %v89
    %130 = vmatprep.subr.mxu0 0.0
    %131 = vmatpush1.msra.mxu0 %v90
    %132 = vmatprep.subr.mxu0 0.0
    %133 = vmatpush1.msra.mxu0 %v91
    %134 = vmatprep.subr.mxu0 0.0
    %135 = vmatpush1.msra.mxu0 %v92
    %136 = vmatprep.subr.mxu0 0.0
    %137 = vmatpush1.msra.mxu0 %v93
    %138 = vmatprep.subr.mxu0 0.0
    %139 = vmatpush1.msra.mxu0 %v94
    %140 = vmatprep.subr.mxu0 0.0
    %141 = vmatpush1.msra.mxu0 %v95
    %142 = vmatprep.subr.mxu0 0.0
    %143 = vmatpush1.msra.mxu0 %v96
    %144 = vmatprep.subr.mxu0 0.0
    %145 = vmatpush1.msra.mxu0 %v97
    %146 = vmatprep.subr.mxu0 0.0
    %147 = vmatpush1.msra.mxu0 %v98
    %148 = vmatprep.subr.mxu0 0.0
    %149 = vmatpush1.msra.mxu0 %v99
    %150 = vmatprep.subr.mxu0 0.0
    %151 = vmatpush1.msra.mxu0 %v100
    %152 = vmatprep.subr.mxu0 0.0
    %153 = vmatpush1.msra.mxu0 %v101
    %154 = vmatprep.subr.mxu0 0.0
    %155 = vmatpush1.msra.mxu0 %v102
    %156 = vmatprep.subr.mxu0 0.0
    %157 = vmatpush1.msra.mxu0 %v103
    %158 = vmatprep.subr.mxu0 0.0
    %159 = vmatpush1.msra.mxu0 %v104
    %160 = vmatprep.subr.mxu0 0.0
    %161 = vmatpush1.msra.mxu0 %v105
    %162 = vmatprep.subr.mxu0 0.0
    %163 = vmatpush1.msra.mxu0 %v106
    %164 = vmatprep.subr.mxu0 0.0
    %165 = vmatpush1.msra.mxu0 %v107
    %166 = vmatprep.subr.mxu0 0.0
    %167 = vmatpush1.msra.mxu0 %v108
    %168 = vmatprep.subr.mxu0 0.0
    %169 = vmatpush1.msra.mxu0 %v109
    %170 = vmatprep.subr.mxu0 0.0
    %171 = vmatpush1.msra.mxu0 %v110
    %172 = vmatprep.subr.mxu0 0.0
    %173 = vmatpush1.msra.mxu0 %v111
    %174 = vmatprep.subr.mxu0 0.0
    %175 = vmatpush1.msra.mxu0 %v112
    %176 = vmatprep.subr.mxu0 0.0
    %177 = vmatpush1.msra.mxu0 %v113
    %178 = vmatprep.subr.mxu0 0.0
    %179 = vmatpush1.msra.mxu0 0.0
    %180 = vmatprep.subr.mxu0 0.0
    %181 = vmatpush1.msra.mxu0 0.0
    %182 = vmatprep.subr.mxu0 0.0
    %183 = vmatpush1.msra.mxu0 0.0
    %184 = vmatprep.subr.mxu0 0.0
    %185 = vmatpush1.msra.mxu0 0.0
    %186 = vmatprep.subr.mxu0 0.0
    %187 = vmatpush1.msra.mxu0 0.0
    %188 = vmatprep.subr.mxu0 0.0
    %189 = vmatpush1.msra.mxu0 0.0
    %190 = vmatprep.subr.mxu0 0.0
    %191 = vmatpush1.msra.mxu0 0.0
    %192 = vmatprep.mubr.f32.mxu0 %v123
    %193 = vmatmul.mubr.f32.gmra.mrb[0].mxu0 %v85
    %v194 = vpop.f32.mrb[0].mxu0
    %v195 = vadd.f32 %v119, %v194
    %v196 = vpop.f32.mrb[0].mxu0
    %197 = vmatprep.mubr.f32.mxu0 %v126
    %198 = vmatmul.mubr.f32.gmra.mrb[0].mxu0 %v87
    %v199 = vpop.f32.mrb[0].mxu0
    %v200 = vadd.f32 %v119, %v199
    %v201 = vpop.f32.mrb[0].mxu0
    %202 = vdwg.mxu0
    %v203 = vld [vmem:[#allocation2] sm:$0xff]
    %v204 = vld [vmem:[#allocation2 + $0x8] sm:$0xff]
    %v205 = vmul.f32 %v203, %v195
    %v206 = vmul.f32 %v204, %v200
    %207 = vadd.xlane.f32.xlu0 %v205
    %v208 = vpop.xlane.xlu0 %207
    %209 = vadd.xlane.f32.xlu0 %v206
    %v210 = vpop.xlane.xlu0 %209
    %v211 = vmul.f32 %v203, %v203
    %v212 = vmul.f32 %v204, %v204
    %213 = vadd.xlane.f32.xlu0 %v211
    %v214 = vpop.xlane.xlu0 %213
    %215 = vadd.xlane.f32.xlu0 %v212
    %v216 = vpop.xlane.xlu0 %215
    %v217 = vmul.f32 %v195, %v195
    %v218 = vmul.f32 %v200, %v200
    %219 = vadd.xlane.f32.xlu0 %v217
    %v220 = vpop.xlane.xlu0 %219
    %221 = vadd.xlane.f32.xlu0 %v218
    %v222 = vpop.xlane.xlu0 %221
    %v223 = vmul.f32 %v214, %v220
    %v224 = vmul.f32 %v216, %v222
    %v225 = vmax.f32 %v223, 1e-16
    %v226 = vmax.f32 %v224, 1e-16
    %v227 = vrsqrt.pop %v225
    %v228 = vrsqrt.pop %v226
    %v229 = vmul.f32 %v208, %v227
    %v230 = vmul.f32 %v210, %v228
    %s231 = sadd.s32 0, 0
    %s232 = smul.u32 %s231, 16
    %v233 = vlaneseq
    %v234 = vshrl.u32 %v233, 7
    %v235 = vadd.s32 %v234, 8
    %v236 = vstv %s232
    %v237 = vadd.s32 %v236, %v234
    %v238 = vadd.s32 %v236, %v235
    %vm239 = vcmp.lt.s32.totalorder %v237, 10
    %vm240 = vcmp.lt.s32.totalorder %v238, 10
    %v241 = vsel %vm239, %v229, 0.0
    %v242 = vsel %vm240, %v230, 0.0
    %v243 = vld [vmem:[#allocation8] sm:$0x1]
    %vm244 = vcmask 7168
    %v245 = vsel %vm244, %v241, 0.0
    %v246 = vsel %vm244, %v242, 0.0
    %v247 = vadd.f32 %v245, %v246
    %248 = vadd.xlane.f32.xlu0 %v247
    %v249 = vpop.xlane.xlu0 %248
    %v250 = vrot.slane %v249, 4
    %v251 = vadd.f32 %v249, %v250
    %v252 = vrot.slane %v251, 2
    %v253 = vadd.f32 %v251, %v252
    %v254 = vrot.slane %v253, 1
    %v255 = vadd.f32 %v253, %v254
    %s256 = vtos %v255
    %v257 = vstv %s256
    %v258 = vadd.f32 %v243, %v257
    %259 = vst [vmem:[#allocation8] sm:$0x1] %v258
    // Predicated region
    $region34: #{tpu_custom_call.1} parent=1 // pred_check
      _
    $region35: #{tpu_custom_call.1} parent=1 // pred_check_branch
      %261 = sbr.rel (0) target = $region37
    $region36: #{tpu_custom_call.1} parent=1 // pred_region
      %s263 = ssub.s32 16, 16
      %264 = vsyncadd [#allocation4], %s263
      %s266 = sshll.u32 [#allocation8], 4
      %s267 = int_to_ptr.vmem [resolvable:$true] %s266
      %269 = dma.vmem_to_hbm [thread:$0]  %s267, 16, %s4, [#allocation4]
    $region37: #{tpu_custom_call.1} parent=1 // pred_fallthru
      _
    // Predicated region
    $region38: #{tpu_custom_call.1} parent=1 // pred_check
      _
    $region39: #{tpu_custom_call.1} parent=1 // pred_check_branch
      %271 = sbr.rel (0) target = $region41
    $region40: #{tpu_custom_call.1} parent=1 // pred_region
      %272 = dma.done [#allocation4], 16
    $region41: #{tpu_custom_call.1} parent=1 // pred_fallthru
      _
    %273 = vsyncpa [#allocation3], 1
    %274 = vsyncpa [#allocation6], 1
    %275 = vsyncpa [#allocation4], 1

</llo_original>
